<compile_context>
chip_gen: v6e
topology: v6e:2x2x1
jax: 0.10.0
libtpu: 0.0.40
codegen_flags: <defaults>
</compile_context>

<pallas_src>
import numpy as np
import jax
import jax.numpy as jnp
from jax.experimental import pallas as pl
from jax.experimental.pallas import tpu as pltpu

COORD = 51
FRAME = 8
D_MODEL = 64

_LANE = 128                     # vreg lane width
_TARGET_TILE_BYTES = 4 << 20    # ~4 MiB per block (per buffer)
_VMEM_HEADROOM = 4 << 20        # Mosaic internal scratch headroom
_VMEM_CAP = 32 << 20            # safe on v5e/v6e (128 MiB) and v7x (64 MiB)


# --------------------------------------------------------------------------
# Primary path: exact forward-pass semantics (pure pass-through, no kernel).
# --------------------------------------------------------------------------
def transformer_forward(src_seq, use=None):
    """Exact equivalent of Transformer.forward: returns [src_seq]."""
    return [src_seq]


# --------------------------------------------------------------------------
# Pallas path 1: streaming identity copy through VMEM (BlockSpec pipeline).
# --------------------------------------------------------------------------
def _copy_kernel(x_ref, o_ref):
    # Identity: copy the current lane-dense tile.
    o_ref[...] = x_ref[...]


def _sublane_multiple(dtype):
    """Sublane alignment for block rows: 8 (4-byte), 16 (2-byte), 32 (1-byte)."""
    itemsize = np.dtype(dtype).itemsize
    return max(8, 32 // max(1, itemsize))


def _round_up(x, m):
    return ((x + m - 1) // m) * m


def _round_down(x, m):
    return (x // m) * m


def _pick_2d_view(shape):
    """Zero-copy 2-D view (rows, lanes) of a contiguous row-major array."""
    n = int(np.prod(shape)) if len(shape) else 1
    # Prefer a wide, fully lane-dense view (unmasked vst) when N allows it.
    for lanes in (1024, 512, 256, 128):
        if n % lanes == 0:
            return n // lanes, lanes
    # Otherwise keep the trailing dim: a block whose last dim equals the full
    # array last dim is always a legal BlockSpec (no padding needed).
    if len(shape) >= 2:
        return n // shape[-1], shape[-1]
    return 1, max(n, 1)


def transformer_forward_pallas(src_seq, use=None, *,
                               target_tile_bytes=_TARGET_TILE_BYTES):
    """Physically materializes `[src_seq]` via an identity copy kernel.

    No wrapper-side pad / slice passes: the input is re-viewed (free bitcast)
    as a 2-D slab and tiled along rows; the output is re-viewed back.
    """
    orig_shape = src_seq.shape
    dtype = src_seq.dtype
    n = int(src_seq.size)
    if n == 0:
        return [src_seq]

    rows, lanes = _pick_2d_view(orig_shape)
    x2d = src_seq.reshape(rows, lanes)          # zero-copy view, no padding

    itemsize = np.dtype(dtype).itemsize
    sub = _sublane_multiple(dtype)
    lanes_padded = _round_up(lanes, _LANE)      # VMEM lane padding per block

    # Block rows: ~target_tile_bytes per buffer, dtype-aware sublane-aligned.
    # Either a multiple of `sub` or equal to the full row count (both legal).
    target_rows = max(sub, _round_down(
        max(target_tile_bytes // (lanes_padded * itemsize), sub), sub))
    t_rows = min(rows, target_rows)

    grid = (pl.cdiv(rows, t_rows),)
    block_bytes = t_rows * lanes_padded * itemsize
    # in + out, double-buffered, plus headroom for Mosaic internal scratch.
    vmem_limit = int(min(_VMEM_CAP, max(8 << 20, 4 * block_bytes + _VMEM_HEADROOM)))

    out2d = pl.pallas_call(
        _copy_kernel,
        out_shape=jax.ShapeDtypeStruct((rows, lanes), dtype),
        grid=grid,
        in_specs=[pl.BlockSpec((t_rows, lanes), lambda i: (i, 0))],
        out_specs=pl.BlockSpec((t_rows, lanes), lambda i: (i, 0)),
        compiler_params=pltpu.CompilerParams(
            dimension_semantics=("parallel",),   # shards tiles across v7x TCs
            vmem_limit_bytes=vmem_limit,
        ),
    )(x2d)

    return [out2d.reshape(orig_shape)]


# --------------------------------------------------------------------------
# Pallas path 2: direct HBM->HBM DMA copy (no VMEM staging, no vld/vst).
# --------------------------------------------------------------------------
def _dma_copy_kernel(x_hbm_ref, o_hbm_ref, sem):
    cp = pltpu.make_async_copy(x_hbm_ref, o_hbm_ref, sem)
    cp.start()
    cp.wait()


def transformer_forward_pallas_dma(src_seq, use=None):
    """Physical copy via one whole-array HBM->HBM DMA (cleanest for a pure copy)."""
    out = pl.pallas_call(
        _dma_copy_kernel,
        out_shape=jax.ShapeDtypeStruct(src_seq.shape, src_seq.dtype),
        in_specs=[pl.BlockSpec(memory_space=pl.ANY)],
        out_specs=pl.BlockSpec(memory_space=pl.ANY),
        scratch_shapes=[pltpu.SemaphoreType.DMA],
    )(src_seq)
    return [out]


# --------------------------------------------------------------------------
# Module parameters (constructed by __init__ but never used by forward).
# --------------------------------------------------------------------------
def _xavier_uniform(key, shape):
    fan_in, fan_out = shape[1], shape[0]
    limit = float(np.sqrt(6.0 / (fan_in + fan_out)))
    return jax.random.uniform(key, shape, jnp.float32, -limit, limit)


def init_unused_params(key):
    """Deterministic init of the module's linear weights.

    TODO(synk): proj_*, l1_*, l2_*, encoder_*, decoder_* are never touched by
    Transformer.forward (it returns [src_seq]); they are initialized only to
    mirror the module's __init__ shapes and contribute no compute.
    """
    shapes = {
        "proj_p": (D_MODEL, COORD), "proj2_p": (D_MODEL, COORD),
        "l1_p": (D_MODEL * 4, D_MODEL), "l2_p": (D_MODEL * FRAME, D_MODEL * 4),
        "proj_inverse_p": (COORD, D_MODEL * FRAME),
        "proj_a": (D_MODEL, COORD), "proj2_a": (D_MODEL, COORD),
        "l1_a": (D_MODEL * 4, D_MODEL), "l2_a": (D_MODEL * FRAME, D_MODEL * 4),
        "proj_inverse_a": (COORD, D_MODEL * FRAME),
        "proj_g": (D_MODEL, COORD), "proj2_g": (D_MODEL, COORD),
        "proj_d": (D_MODEL, COORD), "proj_inverse_m": (COORD, D_MODEL),
    }
    params = {}
    keys = jax.random.split(key, len(shapes))
    for k, (name, shp) in zip(keys, shapes.items()):
        params[name + "_w"] = _xavier_uniform(k, shp)
        params[name + "_b"] = jnp.zeros((shp[0],), jnp.float32)
    return params


if __name__ == "__main__":
    key = jax.random.PRNGKey(0)
    k_x, k_p = jax.random.split(key)

    # Small but representative shape: [batch=2, seq=8, coord=51]
    src_seq = jax.random.normal(k_x, (2, 8, COORD), dtype=jnp.float32)
    src_np = np.asarray(jax.block_until_ready(src_seq))  # snapshot for checks

    _ = init_unused_params(k_p)  # parameters exist but are unused by forward

    # Primary (zero-cost) path: exact pass-through, no kernel.
    out_fast = transformer_forward(src_seq)[0]

    # Pallas path 1: streamed identity copy (no pad, no post-slice, no alias).
    out = jax.block_until_ready(transformer_forward_pallas(src_seq)[0])

    # Pallas path 2: direct HBM->HBM DMA copy.
    out_dma = jax.block_until_ready(transformer_forward_pallas_dma(src_seq)[0])

    # Exercise the dtype-aware sublane alignment with a 16-bit input.
    src_bf16 = src_seq.astype(jnp.bfloat16)
    out_bf16 = jax.block_until_ready(transformer_forward_pallas(src_bf16)[0])

    # Verify exact identity semantics for every path.
    assert out.shape == src_seq.shape and out.dtype == src_seq.dtype
    np.testing.assert_array_equal(np.asarray(out), src_np)
    np.testing.assert_array_equal(np.asarray(out_dma), src_np)
    np.testing.assert_array_equal(
        np.asarray(jax.block_until_ready(out_fast)), src_np)
    assert out_bf16.shape == src_bf16.shape and out_bf16.dtype == jnp.bfloat16
    np.testing.assert_array_equal(
        np.asarray(out_bf16), np.asarray(jax.block_until_ready(src_bf16)))

    print("KERNEL_OK")
</pallas_src>

<mosaic_0001>
module attributes {stable_mosaic.version = 11 : i64} {
  func.func @_copy_kernel(%arg0: i32, %arg1: memref<16x51xf32, #tpu.memory_space<vmem>>, %arg2: memref<16x51xf32, #tpu.memory_space<vmem>>) attributes {dimension_semantics = [#tpu.dimension_semantics<parallel>], iteration_bounds = array<i64: 1>, scalar_prefetch = 0 : i64, scratch_operands = 0 : i64, tpu.core_type = #tpu.core_type<tc>, window_params = [{transform_indices = @transform_0, window_bounds = array<i64: 16, 51>}, {transform_indices = @transform_1, window_bounds = array<i64: 16, 51>}]} {
    %c0 = arith.constant 0 : index
    %c0_0 = arith.constant 0 : index
    %0 = vector.load %arg1[%c0, %c0_0] : memref<16x51xf32, #tpu.memory_space<vmem>>, vector<16x51xf32>
    %c0_1 = arith.constant 0 : index
    %c0_2 = arith.constant 0 : index
    %1 = vector.load %arg2[%c0_1, %c0_2] : memref<16x51xf32, #tpu.memory_space<vmem>>, vector<16x51xf32>
    tpu.vector_store %arg2[%c0_1, %c0_2], %0 {strides = array<i32>} : memref<16x51xf32, #tpu.memory_space<vmem>>, vector<16x51xf32>,
    return
  }
  func.func @transform_0(%arg0: i32) -> (i32, i32) {
    %c0_i32 = arith.constant 0 : i32
    %c0_i32_0 = arith.constant 0 : i32
    return %arg0, %c0_i32 : i32, i32
  }
  func.func @transform_1(%arg0: i32) -> (i32, i32) {
    %c0_i32 = arith.constant 0 : i32
    %c0_i32_0 = arith.constant 0 : i32
    return %arg0, %c0_i32 : i32, i32
  }
}

</mosaic_0001>

<llo_original>
// kernel: tpu_custom_call.1
$region0: #{tpu_custom_call.1}
  #allocation0 [shape = 'u32[]', space=smem, size = 0x4, offset = 0x4, fixed_abs, tag = 'smem constant byte address 0x4 - core index']
  #allocation1 [shape = 'u32[144,128]{1,0:T(1,128)}', space=vmem, size = 0x12000, scoped, tag = 'internal scratch']
  %s0 = inlined_call_operand.hbm [shape: f32[16,51], index: 0, kind: input, shape index: {}]
  %s1 = inlined_call_operand.hbm [shape: f32[16,51], index: 1, kind: output, shape index: {}]
  %s2 = sld [smem:[#allocation0]]
  $region18: #{tpu_custom_call.1} parent=0
    _
  %s4 = ssub.s32 1, %s2
  %s5 = scalar_select 0, %s4, %s2
  $region1: #{tpu_custom_call.1} parent=0
    #allocation2 [shape = 'u8[8192]{0}', space=vmem, size = 0x2000, scoped, tag = 'input window, operand 0, single buffered']
    #allocation3 [shape = 's32[1]{0}', space=sflag, size = 0x4, scoped, tag = 'scoped memory for tpu_custom_call.1']
    #allocation4 [shape = 's32[1]{0}', space=sflag, size = 0x4, scoped, tag = 'scoped memory for tpu_custom_call.1']
    #allocation5 [shape = 'u8[8192]{0}', space=vmem, size = 0x2000, scoped, tag = 'output window, operand 0, single buffered']
    %6 = vsyncpa [#allocation3], 0
    %7 = vsyncpa [#allocation4], 0
    // Predicated region
    $region2: #{tpu_custom_call.1} parent=1 // pred_check
      _
    $region3: #{tpu_custom_call.1} parent=1 // pred_check_branch
      %9 = sbr.rel (0) target = $region5
    $region4: #{tpu_custom_call.1} parent=1 // pred_region
      %s11 = ssub.s32 256, 256
      %12 = vsyncadd [#allocation3], %s11
      %s13 = sshll.u32 [#allocation2], 4
      %s14 = int_to_ptr.vmem [resolvable:$true] %s13
      %19 = dma.hbm_to_vmem [thread:$0]  %s0, 256, %s14, [#allocation3], 128, 128, 8
    $region5: #{tpu_custom_call.1} parent=1 // pred_fallthru
      _
    // Predicated region
    $region6: #{tpu_custom_call.1} parent=1 // pred_check
      _
    $region7: #{tpu_custom_call.1} parent=1 // pred_check_branch
      %21 = sbr.rel (0) target = $region9
    $region8: #{tpu_custom_call.1} parent=1 // pred_region
      %22 = dma.done [#allocation3], 256
    $region9: #{tpu_custom_call.1} parent=1 // pred_fallthru
      _
    %v23 = vld [vmem:[#allocation2] sm:$0xff]
    %v24 = vld [vmem:[#allocation2 + $0x8] sm:$0xff]
    %vm25 = vcmask 416768
    %26 = vst.msk [vmem:[#allocation5] sm:$0xff] %vm25, %v23
    %27 = vst.msk [vmem:[#allocation5 + $0x8] sm:$0xff] %vm25, %v24
    // Predicated region
    $region10: #{tpu_custom_call.1} parent=1 // pred_check
      _
    $region11: #{tpu_custom_call.1} parent=1 // pred_check_branch
      %29 = sbr.rel (0) target = $region13
    $region12: #{tpu_custom_call.1} parent=1 // pred_region
      %s31 = ssub.s32 256, 256
      %32 = vsyncadd [#allocation4], %s31
      %s33 = sshll.u32 [#allocation5], 4
      %s34 = int_to_ptr.vmem [resolvable:$true] %s33
      %39 = dma.vmem_to_hbm [thread:$0]  %s34, 256, %s1, [#allocation4], 128, 128, 8
    $region13: #{tpu_custom_call.1} parent=1 // pred_fallthru
      _
    // Predicated region
    $region14: #{tpu_custom_call.1} parent=1 // pred_check
      _
    $region15: #{tpu_custom_call.1} parent=1 // pred_check_branch
      %41 = sbr.rel (0) target = $region17
    $region16: #{tpu_custom_call.1} parent=1 // pred_region
      %42 = dma.done [#allocation4], 256
    $region17: #{tpu_custom_call.1} parent=1 // pred_fallthru
      _
    %43 = vsyncpa [#allocation3], 1
    %44 = vsyncpa [#allocation4], 1

</llo_original>
